<compile_context>
chip_gen: v7x
topology: tpu7x:2x2x1
jax: 0.10.0
libtpu: 0.0.40
codegen_flags: <defaults>
</compile_context>

<pallas_src>
import math

import jax
import jax.numpy as jnp
from jax.experimental import pallas as pl
from jax.experimental.pallas import tpu as pltpu


def _round_up(x, m):
    return (x + m - 1) // m * m


def _pick_tm(batch):
    """Largest sublane-aligned batch tile that minimizes padded rows."""
    best_tm, best_mp = 8, _round_up(batch, 8)
    for tm in (256, 128, 64, 32, 16, 8):
        mp = _round_up(batch, tm)
        if mp < best_mp or (mp == best_mp and tm > best_tm):
            best_tm, best_mp = tm, mp
    return best_tm, best_mp


def _make_mlp_kernel(resident):
    """Grid = (batch_tiles, num_layers); layer axis innermost ("arbitrary").

    x_ref: (tm, Dp)                      input tile (padded)
    w_ref: (L, Dp, Dp) or (1, Dp, Dp)    resident stack or streamed layer (bf16)
    b_ref: (L, 1, Dp)  or (1, 1, Dp)     biases (f32)
    o_ref: (tm, Dp)                      output tile (written on last layer)
    h_ref: (tm, Dp) f32                  VMEM scratch carrying the activation
    """

    def kernel(x_ref, w_ref, b_ref, o_ref, h_ref):
        l = pl.program_id(1)
        last = pl.num_programs(1) - 1
        wi = l if resident else 0

        @pl.when(l == 0)
        def _():
            h_ref[...] = x_ref[...].astype(jnp.float32)

        # Linear: h @ W_l + b_l  (bf16 MXU inputs, f32 accumulate, f32 epilogue)
        acc = jnp.dot(h_ref[...].astype(w_ref.dtype), w_ref[wi],
                      preferred_element_type=jnp.float32)
        acc = acc + b_ref[wi]  # (1, Dp) broadcasts over rows

        @pl.when(l != last)
        def _():
            h_ref[...] = jnp.maximum(acc, 0.0)

        @pl.when(l == last)
        def _():
            o_ref[...] = acc.astype(o_ref.dtype)

    return kernel


def _predictor_pallas(w_stack, b_stack, embedding, *, input_dim, output_dim,
                      dp, vmem_cap):
    batch = embedding.shape[0]
    num_layers = w_stack.shape[0]
    dtype = embedding.dtype

    tm, mp = _pick_tm(batch)

    # Zero-padding is exact: padded input cols / weight rows / biases are 0,
    # so padded output columns stay 0 through ReLU; padded rows are sliced off.
    x_pad = jnp.zeros((mp, dp), dtype).at[:batch, :input_dim].set(embedding)

    # --- VMEM working-set estimate & residency decision ---------------------
    act_bytes = jnp.dtype(dtype).itemsize
    w_bytes = jnp.dtype(w_stack.dtype).itemsize * dp * dp        # one layer
    b_bytes = 4 * 8 * dp                                         # f32, 8-sublane padded
    io_bytes = 2 * tm * dp * act_bytes * 2                       # x + o, double-buffered
    h_bytes = tm * dp * 4                                        # f32 scratch

    resident_ws = io_bytes + h_bytes + 2 * num_layers * (w_bytes + b_bytes)
    streamed_ws = io_bytes + h_bytes + 3 * w_bytes + 2 * b_bytes

    budget = int(0.8 * vmem_cap)
    resident = resident_ws <= budget
    working = resident_ws if resident else streamed_ws
    # TODO(synk): add N/K tiling (with a k-accumulator) when even the streamed
    # per-layer (Dp, Dp) weight block exceeds the VMEM budget (huge Dp on v7x).
    vmem_limit = int(min(budget, max(2 * working, 16 * 2**20)))

    if resident:
        # Weight/bias stacks loaded once and kept VMEM-resident: block index
        # never changes, so no per-layer / per-batch-tile re-DMA from HBM.
        w_spec = pl.BlockSpec((num_layers, dp, dp), lambda m, l: (0, 0, 0))
        b_spec = pl.BlockSpec((num_layers, 1, dp), lambda m, l: (0, 0, 0))
    else:
        try:
            w_spec = pl.BlockSpec((1, dp, dp), lambda m, l: (l, 0, 0),
                                  pipeline_mode=pl.Buffered(3))
        except TypeError:  # pipeline_mode unavailable -> default double-buffer
            w_spec = pl.BlockSpec((1, dp, dp), lambda m, l: (l, 0, 0))
        b_spec = pl.BlockSpec((1, 1, dp), lambda m, l: (l, 0, 0))

    out = pl.pallas_call(
        _make_mlp_kernel(resident),
        out_shape=jax.ShapeDtypeStruct((mp, dp), dtype),
        grid_spec=pltpu.PrefetchScalarGridSpec(
            num_scalar_prefetch=0,
            grid=(mp // tm, num_layers),
            in_specs=[
                pl.BlockSpec((tm, dp), lambda m, l: (m, 0)),
                w_spec,
                b_spec,
            ],
            out_specs=pl.BlockSpec((tm, dp), lambda m, l: (m, 0)),
            scratch_shapes=[pltpu.VMEM((tm, dp), jnp.float32)],
        ),
        compiler_params=pltpu.CompilerParams(
            dimension_semantics=("parallel", "arbitrary"),
            vmem_limit_bytes=vmem_limit,
        ),
    )(x_pad, w_stack, b_stack)

    return out[:batch, :output_dim]


def build_predictor(params, *, mxu_dtype=jnp.bfloat16):
    """One-time parameter prep (pad/stack/cast) + jitted forward(embedding).

    params: list of (W_t, b) with W_t shaped (in_features, out_features),
    i.e. the PyTorch nn.Linear weight transposed so the kernel computes x @ W + b.
    """
    num_layers = len(params)
    input_dim = params[0][0].shape[0]
    output_dim = params[-1][0].shape[1]
    dp = _round_up(max(input_dim, output_dim), 128)   # lane-dense feature dim

    # Weights stacked (L, Dp, Dp) in MXU dtype (bf16 halves HBM/VMEM bytes,
    # f32 accumulation preserved in-kernel); biases (L, 1, Dp) kept f32 so the
    # VPU epilogue (bias add + ReLU) stays full precision.
    ws, bs = [], []
    for (w_t, b) in params:
        k_l, n_l = w_t.shape
        ws.append(jnp.pad(w_t.astype(mxu_dtype), ((0, dp - k_l), (0, dp - n_l))))
        bs.append(jnp.pad(b.astype(jnp.float32), (0, dp - n_l))[None, :])
    w_stack = jnp.stack(ws)
    b_stack = jnp.stack(bs)

    try:  # generation-aware VMEM budget (v5e/v6e: 128 MiB, v7x: 64 MiB per core)
        vmem_cap = int(pltpu.get_tpu_info().vmem_capacity_bytes)
    except Exception:
        vmem_cap = 64 * 2**20  # conservative fallback

    @jax.jit
    def forward(embedding):
        return _predictor_pallas(w_stack, b_stack, embedding,
                                 input_dim=input_dim, output_dim=output_dim,
                                 dp=dp, vmem_cap=vmem_cap)

    return forward


def init_predictor_params(key, input_dim, output_dim, num_layers, dtype=jnp.float32):
    """Deterministic init mimicking nn.Linear default (uniform +/- 1/sqrt(fan_in)).

    Weights are stored pre-transposed: (in_features, out_features).
    """
    params = []
    dims = [(input_dim, output_dim)] + [(output_dim, output_dim)] * (num_layers - 1)
    for (fan_in, fan_out) in dims:
        key, kw, kb = jax.random.split(key, 3)
        bound = 1.0 / math.sqrt(fan_in)
        w_t = jax.random.uniform(kw, (fan_in, fan_out), dtype, -bound, bound)
        b = jax.random.uniform(kb, (fan_out,), dtype, -bound, bound)
        params.append((w_t, b))
    return params


def predictor_forward_ref(params, embedding):
    """Pure-JAX f32 reference matching PyTorch semantics."""
    h = embedding
    num_layers = len(params)
    for layer in range(num_layers - 1):
        w_t, b = params[layer]
        h = jnp.maximum(h @ w_t + b, 0.0)
    w_t, b = params[num_layers - 1]
    return h @ w_t + b


def predictor_forward_matched_ref(params, embedding, mxu_dtype):
    """Reference applying the same MXU-input rounding as the kernel (f32 accum)."""
    h = embedding.astype(jnp.float32)
    num_layers = len(params)
    for i, (w_t, b) in enumerate(params):
        acc = (h.astype(mxu_dtype).astype(jnp.float32)
               @ w_t.astype(mxu_dtype).astype(jnp.float32)) + b.astype(jnp.float32)
        h = acc if i == num_layers - 1 else jnp.maximum(acc, 0.0)
    return h


if __name__ == "__main__":
    batch = 8
    input_dim = 32
    output_dim = 32
    num_layers = 3

    key = jax.random.PRNGKey(0)
    key, k_x = jax.random.split(key)
    x = jax.random.normal(k_x, (batch, input_dim), dtype=jnp.float32)

    params = init_predictor_params(key, input_dim, output_dim, num_layers)

    forward = build_predictor(params)                 # bf16 MXU inputs, f32 accumulate
    out = jax.block_until_ready(forward(x))

    assert out.shape == (batch, output_dim)

    # Tight check vs a reference with identical bf16 rounding of MXU inputs.
    ref_matched = predictor_forward_matched_ref(params, x, jnp.bfloat16)
    assert jnp.allclose(out, ref_matched, atol=1e-3, rtol=1e-3), "mismatch (matched ref)"

    # Loose check vs the exact f32 PyTorch-semantics reference (bf16 MXU inputs).
    ref_f32 = predictor_forward_ref(params, x)
    assert jnp.allclose(out, ref_f32, atol=5e-2, rtol=5e-2), "mismatch (f32 ref)"

    print("KERNEL_OK")
</pallas_src>

<mosaic_0001>
module attributes {stable_mosaic.version = 11 : i64} {
  func.func @kernel(%arg0: i32, %arg1: i32, %arg2: memref<8x128xf32, #tpu.memory_space<vmem>>, %arg3: memref<3x128x128xbf16, #tpu.memory_space<vmem>>, %arg4: memref<3x1x128xf32, #tpu.memory_space<vmem>>, %arg5: memref<8x128xf32, #tpu.memory_space<vmem>>, %arg6: memref<8x128xf32, #tpu.memory_space<vmem>>) attributes {dimension_semantics = [#tpu.dimension_semantics<parallel>, #tpu.dimension_semantics<arbitrary>], iteration_bounds = array<i64: 1, 3>, scalar_prefetch = 0 : i64, scratch_operands = 1 : i64, tpu.core_type = #tpu.core_type<tc>, window_params = [{transform_indices = @transform_0, window_bounds = array<i64: 8, 128>}, {pipeline_mode = #tpu.pipeline_mode<synchronous>, transform_indices = @transform_1, window_bounds = array<i64: 3, 128, 128>}, {pipeline_mode = #tpu.pipeline_mode<synchronous>, transform_indices = @transform_2, window_bounds = array<i64: 3, 1, 128>}, {transform_indices = @transform_3, window_bounds = array<i64: 8, 128>}]} {
    %c0_i32 = arith.constant 0 : i32
    %0 = arith.cmpi eq, %arg1, %c0_i32 : i32
    %1 = arith.extui %0 : i1 to i32
    %c0_i32_0 = arith.constant 0 : i32
    %2 = arith.cmpi ne, %1, %c0_i32_0 : i32
    scf.if %2 {
      %c0_9 = arith.constant 0 : index
      %c0_10 = arith.constant 0 : index
      %20 = vector.load %arg2[%c0_9, %c0_10] : memref<8x128xf32, #tpu.memory_space<vmem>>, vector<8x128xf32>
      %c0_11 = arith.constant 0 : index
      %c0_12 = arith.constant 0 : index
      %21 = vector.load %arg6[%c0_11, %c0_12] : memref<8x128xf32, #tpu.memory_space<vmem>>, vector<8x128xf32>
      tpu.vector_store %arg6[%c0_11, %c0_12], %20 {strides = array<i32>} : memref<8x128xf32, #tpu.memory_space<vmem>>, vector<8x128xf32>,
    } else {
    }
    %c0 = arith.constant 0 : index
    %c0_1 = arith.constant 0 : index
    %3 = vector.load %arg6[%c0, %c0_1] : memref<8x128xf32, #tpu.memory_space<vmem>>, vector<8x128xf32>
    %4 = arith.truncf %3 : vector<8x128xf32> to vector<8x128xbf16>
    %5 = arith.index_cast %arg1 : i32 to index
    %c0_2 = arith.constant 0 : index
    %c0_3 = arith.constant 0 : index
    %6 = vector.load %arg3[%5, %c0_2, %c0_3] : memref<3x128x128xbf16, #tpu.memory_space<vmem>>, vector<1x128x128xbf16>
    %7 = vector.shape_cast %6 : vector<1x128x128xbf16> to vector<128x128xbf16>
    %cst = arith.constant dense<0.000000e+00> : vector<8x128xf32>
    %8 = tpu.matmul %4, %7, %cst {dimension_numbers = #tpu.dot_dimension_numbers<[1], [0], [0], [1], [0, 0, 1, 1], [], []>} : vector<8x128xbf16>, vector<128x128xbf16>, vector<8x128xf32> -> vector<8x128xf32>
    %9 = arith.index_cast %arg1 : i32 to index
    %c0_4 = arith.constant 0 : index
    %c0_5 = arith.constant 0 : index
    %10 = vector.load %arg4[%9, %c0_4, %c0_5] : memref<3x1x128xf32, #tpu.memory_space<vmem>>, vector<1x1x128xf32>
    %11 = vector.shape_cast %10 : vector<1x1x128xf32> to vector<1x128xf32>
    %12 = vector.broadcast %11 : vector<1x128xf32> to vector<8x128xf32>
    %13 = arith.addf %8, %12 : vector<8x128xf32>
    %c2_i32 = arith.constant 2 : i32
    %14 = arith.cmpi ne, %arg1, %c2_i32 : i32
    %15 = arith.extui %14 : i1 to i32
    %c0_i32_6 = arith.constant 0 : i32
    %16 = arith.cmpi ne, %15, %c0_i32_6 : i32
    scf.if %16 {
      %cst_9 = arith.constant 0.000000e+00 : f32
      %20 = vector.broadcast %cst_9 : f32 to vector<8x128xf32>
      %21 = arith.maximumf %13, %20 : vector<8x128xf32>
      %c0_10 = arith.constant 0 : index
      %c0_11 = arith.constant 0 : index
      %22 = vector.load %arg6[%c0_10, %c0_11] : memref<8x128xf32, #tpu.memory_space<vmem>>, vector<8x128xf32>
      tpu.vector_store %arg6[%c0_10, %c0_11], %21 {strides = array<i32>} : memref<8x128xf32, #tpu.memory_space<vmem>>, vector<8x128xf32>,
    } else {
    }
    %c2_i32_7 = arith.constant 2 : i32
    %17 = arith.cmpi eq, %arg1, %c2_i32_7 : i32
    %18 = arith.extui %17 : i1 to i32
    %c0_i32_8 = arith.constant 0 : i32
    %19 = arith.cmpi ne, %18, %c0_i32_8 : i32
    scf.if %19 {
      %c0_9 = arith.constant 0 : index
      %c0_10 = arith.constant 0 : index
      %20 = vector.load %arg5[%c0_9, %c0_10] : memref<8x128xf32, #tpu.memory_space<vmem>>, vector<8x128xf32>
      tpu.vector_store %arg5[%c0_9, %c0_10], %13 {strides = array<i32>} : memref<8x128xf32, #tpu.memory_space<vmem>>, vector<8x128xf32>,
    } else {
    }
    return
  }
  func.func @transform_0(%arg0: i32, %arg1: i32) -> (i32, i32) {
    %c0_i32 = arith.constant 0 : i32
    %c0_i32_0 = arith.constant 0 : i32
    return %arg0, %c0_i32 : i32, i32
  }
  func.func @transform_1(%arg0: i32, %arg1: i32) -> (i32, i32, i32) {
    %c0_i32 = arith.constant 0 : i32
    %c0_i32_0 = arith.constant 0 : i32
    %c0_i32_1 = arith.constant 0 : i32
    %c0_i32_2 = arith.constant 0 : i32
    return %c0_i32, %c0_i32_0, %c0_i32_1 : i32, i32, i32
  }
  func.func @transform_2(%arg0: i32, %arg1: i32) -> (i32, i32, i32) {
    %c0_i32 = arith.constant 0 : i32
    %c0_i32_0 = arith.constant 0 : i32
    %c0_i32_1 = arith.constant 0 : i32
    %c0_i32_2 = arith.constant 0 : i32
    return %c0_i32, %c0_i32_0, %c0_i32_1 : i32, i32, i32
  }
  func.func @transform_3(%arg0: i32, %arg1: i32) -> (i32, i32) {
    %c0_i32 = arith.constant 0 : i32
    %c0_i32_0 = arith.constant 0 : i32
    return %arg0, %c0_i32 : i32, i32
  }
}

</mosaic_0001>

<llo_original>
// kernel: forward.1
$region0: #{forward.1}
  #allocation0 [shape = 'u32[]', space=smem, size = 0x4, offset = 0x4, fixed_abs, tag = 'smem constant byte address 0x4 - core index']
  #allocation1 [shape = 'u32[144,128]{1,0:T(1,128)}', space=vmem, size = 0x12000, scoped, tag = 'internal scratch']
  #allocation2 [shape = 'f32[8,128]{1,0:T(8,128)}', space=vmem, size = 0x1000, scoped, tag = 'scratch operand']
  %s0 = inlined_call_operand.vmem [shape: f32[8,128], index: 0, kind: input, shape index: {}]
  %s1 = inlined_call_operand.hbm [shape: bf16[3,128,128], index: 1, kind: input, shape index: {}]
  %s2 = inlined_call_operand.vmem [shape: f32[3,1,128], index: 2, kind: input, shape index: {}]
  %s3 = inlined_call_operand.hbm [shape: f32[8,128], index: 3, kind: output, shape index: {}]
  %s4 = sld [smem:[#allocation0]]
  $region61: #{forward.1} parent=0
    _
  %s6 = ssub.s32 1, %s4
  %s7 = scalar_select 0, %s6, %s4
  $region1: #{forward.1} parent=0
    #allocation3 [shape = 'u8[98304]{0}', space=vmem, size = 0x18000, scoped, tag = 'input window, operand 1, single buffered']
    #allocation4 [shape = 's32[2]{0}', space=sflag, size = 0x8, scoped, tag = 'scoped memory for forward.1']
    #allocation5 [shape = 's32[2]{0}', space=sflag, size = 0x8, scoped, tag = 'scoped memory for forward.1']
    #allocation6 [shape = 'u8[4096]{0}', space=vmem, size = 0x1000, scoped, tag = 'output window, operand 0, single buffered']
    %8 = vsyncpa [#allocation4], 0
    %9 = vsyncpa [#allocation5], 0
    loop: start=0, step=1, limit=5
    $region2: #{forward.1} parent=1 // loop_pre_header
      _
    $region3: #{forward.1} parent=1 // loop_header
      %s11 = sphi 0, %s15
      %p12 = scmp.ge.s32.totalorder %s11, 5
      %s18 = sphi 0, %s30
      %s19 = sphi 0, %s26
      %s20 = sphi 0, %s18
      %s21 = sphi 0, %s19
      %s22 = sphi 0, %s20
      %s23 = sphi 0, %s21
      %s33 = sphi 0, %s35
      %s36 = sphi 0, %s33
      %s37 = sphi 0, %s36
      %s53 = sphi 0, %s37
      %s57 = sphi 0, %s57
      %s59 = sphi 0, %s57
      %s60 = sphi 0, %s59
      %s74 = sphi 0, %s60
      %s78 = sphi 0, %s78
      %s80 = sphi 0, %s78
      %s81 = sphi 0, %s80
      %s95 = sphi 0, %s81
      %s101 = sphi 0, %s103
      %s104 = sphi 0, %s101
      %s105 = sphi 0, %s104
      %s121 = sphi 0, %s105
    $region4: #{forward.1} parent=1 // loop_header_branch
      %14 = sbr.rel (%p12) target = $region8
    $region5: #{forward.1} parent=1 // loop_body
      %s16 = ssub.s32 %s11, 1
      %s17 = ssub.s32 %s11, 2
      %s24 = sadd.s32 1, %s19
      %p25 = scmp.ge.s32.totalorder %s24, 3
      %s26 = scalar_select %p25, 0, %s24
      %s27 = sadd.s32 1, %s18
      %s28 = scalar_select %p25, %s27, %s18
      %p29 = scmp.ge.s32.totalorder %s28, 1
      %s30 = scalar_select %p29, 0, %s28
      %s31 = ssub.s32 %s18, %s30
      %p32 = scmp.eq.s32.totalorder %s31, 0
      %s34 = sadd.s32 %s33, 1
      %s35 = scalar_select %p32, %s33, %s34
      %p38 = pneg %p32
      %p39 = scmp.eq.s32.totalorder %s11, 2
      %p40 = por %p38, %p39
      %p41 = scmp.ne.s32.totalorder %s33, %s36
      %p42 = scmp.eq.s32.totalorder %s11, 0
      %p43 = por %p41, %p42
      %p44 = scmp.ne.s32.totalorder %s33, %s36
      %p45 = scmp.eq.s32.totalorder %s16, 2
      %p46 = por %p44, %p45
      %p47 = scmp.ne.s32.totalorder %s36, %s37
      %p48 = scmp.eq.s32.totalorder %s16, 0
      %p49 = por %p47, %p48
      %p50 = scmp.ne.s32.totalorder %s36, %s37
      %p51 = scmp.eq.s32.totalorder %s17, 2
      %p52 = por %p50, %p51
      %p54 = scmp.ne.s32.totalorder %s37, %s53
      %p55 = scmp.eq.s32.totalorder %s17, 0
      %p56 = por %p54, %p55
      %s58 = sadd.s32 %s57, 1
      %p61 = scmp.eq.s32.totalorder %s11, 2
      %p62 = scmp.ne.s32.totalorder %s57, %s59
      %p63 = scmp.eq.s32.totalorder %s11, 0
      %p64 = por %p62, %p63
      %p65 = scmp.ne.s32.totalorder %s57, %s59
      %p66 = scmp.eq.s32.totalorder %s16, 2
      %p67 = por %p65, %p66
      %p68 = scmp.ne.s32.totalorder %s59, %s60
      %p69 = scmp.eq.s32.totalorder %s16, 0
      %p70 = por %p68, %p69
      %p71 = scmp.ne.s32.totalorder %s59, %s60
      %p72 = scmp.eq.s32.totalorder %s17, 2
      %p73 = por %p71, %p72
      %p75 = scmp.ne.s32.totalorder %s60, %s74
      %p76 = scmp.eq.s32.totalorder %s17, 0
      %p77 = por %p75, %p76
      %s79 = sadd.s32 %s78, 1
      %p82 = scmp.eq.s32.totalorder %s11, 2
      %p83 = scmp.ne.s32.totalorder %s78, %s80
      %p84 = scmp.eq.s32.totalorder %s11, 0
      %p85 = por %p83, %p84
      %p86 = scmp.ne.s32.totalorder %s78, %s80
      %p87 = scmp.eq.s32.totalorder %s16, 2
      %p88 = por %p86, %p87
      %p89 = scmp.ne.s32.totalorder %s80, %s81
      %p90 = scmp.eq.s32.totalorder %s16, 0
      %p91 = por %p89, %p90
      %p92 = scmp.ne.s32.totalorder %s80, %s81
      %p93 = scmp.eq.s32.totalorder %s17, 2
      %p94 = por %p92, %p93
      %p96 = scmp.ne.s32.totalorder %s81, %s95
      %p97 = scmp.eq.s32.totalorder %s17, 0
      %p98 = por %p96, %p97
      %s99 = ssub.s32 %s18, %s30
      %p100 = scmp.eq.s32.totalorder %s99, 0
      %s102 = sadd.s32 %s101, 1
      %s103 = scalar_select %p100, %s101, %s102
      %p106 = pneg %p100
      %p107 = scmp.eq.s32.totalorder %s11, 2
      %p108 = por %p106, %p107
      %p109 = scmp.ne.s32.totalorder %s101, %s104
      %p110 = scmp.eq.s32.totalorder %s11, 0
      %p111 = por %p109, %p110
      %p112 = scmp.ne.s32.totalorder %s101, %s104
      %p113 = scmp.eq.s32.totalorder %s16, 2
      %p114 = por %p112, %p113
      %p115 = scmp.ne.s32.totalorder %s104, %s105
      %p116 = scmp.eq.s32.totalorder %s16, 0
      %p117 = por %p115, %p116
      %p118 = scmp.ne.s32.totalorder %s104, %s105
      %p119 = scmp.eq.s32.totalorder %s17, 2
      %p120 = por %p118, %p119
      %p122 = scmp.ne.s32.totalorder %s105, %s121
      %p123 = scmp.eq.s32.totalorder %s17, 0
      %p124 = por %p122, %p123
      %p125 = scmp.le.s32.totalorder 1, %s11
      %p126 = scmp.lt.s32.totalorder %s11, 4
      %p127 = pnand %p125, %p126
      %p128 = pneg %p127
      // Predicated region
      $region9: #{forward.1} parent=5 // pred_check
        _
      $region10: #{forward.1} parent=5 // pred_check_branch
        %130 = sbr.rel (%p127) target = $region12
      $region11: #{forward.1} parent=5 // pred_region
        %s131 = ssub.s32 %s11, 1
        // Predicated region
        $region13: #{forward.1} parent=11 // pred_check
          %p132 = pneg %p49
        $region14: #{forward.1} parent=11 // pred_check_branch
          %134 = sbr.rel (%p132) target = $region16
        $region15: #{forward.1} parent=11 // pred_region
          %p135 = scmp.lt.s32.totalorder %s20, 0
          %s136 = scalar_select %p135, %s20, 0
          %s137 = smul.addr %s136, 8
          %s138 = scalar_lea.vmem %s0, %s137
        $region16: #{forward.1} parent=11 // pred_fallthru
          _
        // Predicated region
        $region17: #{forward.1} parent=11 // pred_check
          %p139 = pneg %p70
        $region18: #{forward.1} parent=11 // pred_check_branch
          %141 = sbr.rel (%p139) target = $region20
        $region19: #{forward.1} parent=11 // pred_region
          %s143 = ssub.s32 3072, 3072
          %144 = vsyncadd [#allocation4], %s143
          %s145 = sshll.u32 [#allocation3], 4
          %s146 = int_to_ptr.vmem [resolvable:$true] %s145
          %151 = dma.hbm_to_vmem [thread:$0]  %s1, 3072, %s146, [#allocation4], 64, 64, 4
        $region20: #{forward.1} parent=11 // pred_fallthru
          _
        // Predicated region
        $region21: #{forward.1} parent=11 // pred_check
          %p152 = pneg %p91
        $region22: #{forward.1} parent=11 // pred_check_branch
          %154 = sbr.rel (%p152) target = $region24
        $region23: #{forward.1} parent=11 // pred_region
          _
        $region24: #{forward.1} parent=11 // pred_fallthru
          _
      $region12: #{forward.1} parent=5 // pred_fallthru
        _
      %p155 = scmp.lt.s32.totalorder %s11, 3
      // Predicated region
      $region25: #{forward.1} parent=5 // pred_check
        %p156 = pneg %p155
      $region26: #{forward.1} parent=5 // pred_check_branch
        %158 = sbr.rel (%p156) target = $region28
      $region27: #{forward.1} parent=5 // pred_region
        _
      $region28: #{forward.1} parent=5 // pred_fallthru
        _
      %p159 = scmp.le.s32.totalorder 1, %s11
      %p160 = scmp.lt.s32.totalorder %s11, 4
      %p161 = pnand %p159, %p160
      %p162 = pneg %p161
      // Predicated region
      $region29: #{forward.1} parent=5 // pred_check
        _
      $region30: #{forward.1} parent=5 // pred_check_branch
        %164 = sbr.rel (%p161) target = $region32
      $region31: #{forward.1} parent=5 // pred_region
        %s165 = ssub.s32 %s11, 1
        // Predicated region
        $region33: #{forward.1} parent=31 // pred_check
          %p166 = pneg %p70
        $region34: #{forward.1} parent=31 // pred_check_branch
          %168 = sbr.rel (%p166) target = $region36
        $region35: #{forward.1} parent=31 // pred_region
          %169 = dma.done [#allocation4], 3072
        $region36: #{forward.1} parent=31 // pred_fallthru
          _
        %p170 = scmp.lt.s32.totalorder %s20, 0
        %s171 = scalar_select %p170, %s20, 0
        %s172 = smul.addr %s171, 8
        %s173 = scalar_lea.vmem %s0, %s172
        %p174 = pneg %p49
        %p175 = pneg %p46
        %p176 = pneg %p70
        %p177 = pneg %p67
        %p178 = pneg %p91
        %p179 = pneg %p88
        %p180 = pneg %p117
        %p181 = pneg %p114
        %p182 = scmp.lt.s32.totalorder %s20, 0
        %s183 = scalar_select %p182, %s20, 0
        %s184 = smul.addr %s183, 8
        %s185 = scalar_lea.vmem %s0, %s184
        %p187 = scmp.eq.s32.totalorder %s21, 0
        // Predicated region
        $region37: #{forward.1} parent=31 // pred_check
          %p188 = pneg %p187
        $region38: #{forward.1} parent=31 // pred_check_branch
          %190 = sbr.rel (%p188) target = $region40
        $region39: #{forward.1} parent=31 // pred_region
          %v191 = vld [vmem:[%s185] sm:$0xff]
          %192 = vst [vmem:[#allocation2] sm:$0xff] %v191
        $region40: #{forward.1} parent=31 // pred_fallthru
          _
        %v193 = vld [vmem:[#allocation2] sm:$0xff]
        %v194 = vpack.c.bf16 %v193, %v193
        %s195 = smul.u32 %s21, 16
        %s196 = smul.addr %s195, 4
        %s197 = scalar_lea.vmem [#allocation3], %s196
        %v198 = vld [vmem:[%s197] sm:$0xf]
        %v199 = vld [vmem:[%s197 + $0x4] sm:$0xf]
        %v200 = vld [vmem:[%s197 + $0x8] sm:$0xf]
        %v201 = vld [vmem:[%s197 + $0xc] sm:$0xf]
        %v202 = vld [vmem:[%s197 + $0x10] sm:$0xf]
        %v203 = vld [vmem:[%s197 + $0x14] sm:$0xf]
        %v204 = vld [vmem:[%s197 + $0x18] sm:$0xf]
        %v205 = vld [vmem:[%s197 + $0x1c] sm:$0xf]
        %v206 = vld [vmem:[%s197 + $0x20] sm:$0xf]
        %v207 = vld [vmem:[%s197 + $0x24] sm:$0xf]
        %v208 = vld [vmem:[%s197 + $0x28] sm:$0xf]
        %v209 = vld [vmem:[%s197 + $0x2c] sm:$0xf]
        %v210 = vld [vmem:[%s197 + $0x30] sm:$0xf]
        %v211 = vld [vmem:[%s197 + $0x34] sm:$0xf]
        %v212 = vld [vmem:[%s197 + $0x38] sm:$0xf]
        %v213 = vld [vmem:[%s197 + $0x3c] sm:$0xf]
        %s214 = scalar_lea.vmem %s2, %s21
        %v215 = vld [vmem:[%s214] sm:$0x1]
        %v217 = vlaneseq
        %v218 = vshrl.u32 %v217, 7
        %v219 = vsub.s32 0, %v218
        %v220 = vrot.slane %v215, %v219
        %v238 = vunpack.c.l.b16 %v198
        %v239 = vunpack.c.l.b16 %v199
        %v240 = vunpack.c.l.b16 %v200
        %v241 = vunpack.c.l.b16 %v201
        %v242 = vunpack.c.l.b16 %v202
        %v243 = vunpack.c.l.b16 %v203
        %v244 = vunpack.c.l.b16 %v204
        %v245 = vunpack.c.l.b16 %v205
        %v246 = vunpack.c.l.b16 %v206
        %v247 = vunpack.c.l.b16 %v207
        %v248 = vunpack.c.l.b16 %v208
        %v249 = vunpack.c.l.b16 %v209
        %v250 = vunpack.c.l.b16 %v210
        %v251 = vunpack.c.l.b16 %v211
        %v252 = vunpack.c.l.b16 %v212
        %v253 = vunpack.c.l.b16 %v213
        %v254 = vpack.c.b16 %v239, %v238
        %v255 = vpack.c.b16 %v241, %v240
        %v256 = vpack.c.b16 %v243, %v242
        %v257 = vpack.c.b16 %v245, %v244
        %v258 = vpack.c.b16 %v247, %v246
        %v259 = vpack.c.b16 %v249, %v248
        %v260 = vpack.c.b16 %v251, %v250
        %v261 = vpack.c.b16 %v253, %v252
        %270 = vmatprep.subr.bf16.mxu0 0
        %271 = vmatpush1.bf16.msra.mxu0 %v254
        %272 = vmatprep.subr.bf16.mxu0 0
        %273 = vmatpush1.bf16.msra.mxu0 %v255
        %274 = vmatprep.subr.bf16.mxu0 0
        %275 = vmatpush1.bf16.msra.mxu0 %v256
        %276 = vmatprep.subr.bf16.mxu0 0
        %277 = vmatpush1.bf16.msra.mxu0 %v257
        %278 = vmatprep.subr.bf16.mxu0 0
        %279 = vmatpush1.bf16.msra.mxu0 %v258
        %280 = vmatprep.subr.bf16.mxu0 0
        %281 = vmatpush1.bf16.msra.mxu0 %v259
        %282 = vmatprep.subr.bf16.mxu0 0
        %283 = vmatpush1.bf16.msra.mxu0 %v260
        %284 = vmatprep.subr.bf16.mxu0 0
        %285 = vmatpush1.bf16.msra.mxu0 %v261
        %286 = vmatprep.subr.bf16.mxu0 0
        %287 = vmatpush1.bf16.msra.mxu0 0
        %288 = vmatprep.subr.bf16.mxu0 0
        %289 = vmatpush1.bf16.msra.mxu0 0
        %290 = vmatprep.subr.bf16.mxu0 0
        %291 = vmatpush1.bf16.msra.mxu0 0
        %292 = vmatprep.subr.bf16.mxu0 0
        %293 = vmatpush1.bf16.msra.mxu0 0
        %294 = vmatprep.subr.bf16.mxu0 0
        %295 = vmatpush1.bf16.msra.mxu0 0
        %296 = vmatprep.subr.bf16.mxu0 0
        %297 = vmatpush1.bf16.msra.mxu0 0
        %298 = vmatprep.subr.bf16.mxu0 0
        %299 = vmatpush1.bf16.msra.mxu0 0
        %300 = vmatprep.subr.bf16.mxu0 0
        %301 = vmatpush1.bf16.msra.mxu0 0
        %302 = vmatprep.mubr.bf16.mxu0 0
        %303 = vmatmul.mubr.bf16.gmra.mrb[0].mxu0 %v194
        %v304 = vpop.f32.mrb[0].mxu0
        %v305 = vadd.f32 %v220, %v304
        %v306 = vpop.f32.mrb[0].mxu0
        %v307 = vpop.f32.mrb[0].mxu0
        %v308 = vpop.f32.mrb[0].mxu0
        %309 = vdwg.mxu0
        %p310 = scmp.ne.s32.totalorder %s21, 2
        // Predicated region
        $region41: #{forward.1} parent=31 // pred_check
          %p311 = pneg %p310
        $region42: #{forward.1} parent=31 // pred_check_branch
          %313 = sbr.rel (%p311) target = $region44
        $region43: #{forward.1} parent=31 // pred_region
          %v314 = vmax.f32 %v305, 0.0
          %315 = vst [vmem:[#allocation2] sm:$0xff] %v314
        $region44: #{forward.1} parent=31 // pred_fallthru
          _
        %p316 = scmp.eq.s32.totalorder %s21, 2
        // Predicated region
        $region45: #{forward.1} parent=31 // pred_check
          %p317 = pneg %p316
        $region46: #{forward.1} parent=31 // pred_check_branch
          %319 = sbr.rel (%p317) target = $region48
        $region47: #{forward.1} parent=31 // pred_region
          %320 = vst [vmem:[#allocation6] sm:$0xff] %v305
        $region48: #{forward.1} parent=31 // pred_fallthru
          _
        // Predicated region
        $region49: #{forward.1} parent=31 // pred_check
          %p321 = pneg %p114
        $region50: #{forward.1} parent=31 // pred_check_branch
          %323 = sbr.rel (%p321) target = $region52
        $region51: #{forward.1} parent=31 // pred_region
          %s325 = ssub.s32 128, 128
          %326 = vsyncadd [#allocation5], %s325
          %s327 = smul.addr %s20, 128
          %s328 = scalar_lea.hbm %s3, %s327
          %s330 = sshll.u32 [#allocation6], 4
          %s331 = int_to_ptr.vmem [resolvable:$true] %s330
          %333 = dma.vmem_to_hbm [thread:$0]  %s331, 128, %s328, [#allocation5]
        $region52: #{forward.1} parent=31 // pred_fallthru
          _
        // Predicated region
        $region53: #{forward.1} parent=31 // pred_check
          %p334 = pneg %p114
        $region54: #{forward.1} parent=31 // pred_check_branch
          %336 = sbr.rel (%p334) target = $region56
        $region55: #{forward.1} parent=31 // pred_region
          %337 = dma.done [#allocation5], 128
        $region56: #{forward.1} parent=31 // pred_fallthru
          _
      $region32: #{forward.1} parent=5 // pred_fallthru
        _
      %p338 = scmp.le.s32.totalorder 2, %s11
      // Predicated region
      $region57: #{forward.1} parent=5 // pred_check
        %p339 = pneg %p338
      $region58: #{forward.1} parent=5 // pred_check_branch
        %341 = sbr.rel (%p339) target = $region60
      $region59: #{forward.1} parent=5 // pred_region
        %s342 = ssub.s32 %s11, 2
      $region60: #{forward.1} parent=5 // pred_fallthru
        _
    $region6: #{forward.1} parent=1 // loop_footer
      %s15 = sadd.s32 1, %s11
    $region7: #{forward.1} parent=1 // loop_footer_branch
      %10 = sbr.rel target = $region3
    $region8: #{forward.1} parent=1 // loop_exit
      _
    %343 = vsyncpa [#allocation4], 1
    %s344 = scalar_lea.sflag [#allocation4], 1
    %345 = vsyncpa %s344, 1
    %346 = vsyncpa [#allocation5], 1
    %s347 = scalar_lea.sflag [#allocation5], 1
    %348 = vsyncpa %s347, 1

</llo_original>
